<compile_context>
chip_gen: v5e
topology: v5e:2x2
jax: 0.10.0
libtpu: 0.0.40
codegen_flags: <defaults>
</compile_context>

<pallas_src>
import jax
import jax.numpy as jnp
from jax.experimental import pallas as pl
from jax.experimental.pallas import tpu as pltpu


# ---------------------------------------------------------------------------
# Kernel: one fused MLP covering the whole ensemble.
#   h[b, m*H + j] = relu( x[b, :] . W1[m, :, j] + b1[m, j] )   (lane-dense [B, N*H])
#   out          = h_concat @ (W2_rowstack / N) + mean_m(b2_m) (single K = N*H dot)
# ---------------------------------------------------------------------------
def ensemble_fused_kernel(x_ref, w1_ref, b1_ref, w2_ref, b2_ref, o_ref):
    h = jnp.dot(x_ref[...], w1_ref[...], preferred_element_type=jnp.float32)
    h = jnp.maximum(h + b1_ref[...], 0.0)
    y = jnp.dot(h, w2_ref[...], preferred_element_type=jnp.float32)
    o_ref[...] = (y + b2_ref[...]).astype(o_ref.dtype)


# ---------------------------------------------------------------------------
# One-time preprocessing (done when the ensemble is built, NOT per forward call).
# Pure layout plumbing + the 1/N fold; no per-call FLOPs remain in the wrapper.
# ---------------------------------------------------------------------------
def build_ensemble_params(w1, b1, w2, b2):
    """w1: [N, D_in, H]; b1: [N, 1, H]; w2: [N, H, D_out]; b2: [N, 1, D_out].

    Returns (w1_all [D_in, N*H], b1_all [1, N*H], w2_all [N*H, D_out] pre-scaled
    by 1/N, b2_mean [1, D_out])."""
    n_models, d_in, hidden = w1.shape
    d_out = w2.shape[-1]
    w1_all = jnp.transpose(w1, (1, 0, 2)).reshape(d_in, n_models * hidden)
    b1_all = jnp.transpose(b1, (1, 0, 2)).reshape(1, n_models * hidden)
    # Row-stack W2 so the sum over models is one MXU contraction, and fold the
    # ensemble mean (1/N) into the weights here, offline.
    w2_all = w2.reshape(n_models * hidden, d_out) * (1.0 / n_models)
    b2_mean = jnp.mean(b2, axis=0)  # [1, D_out]
    return (
        jax.device_put(w1_all),
        jax.device_put(b1_all),
        jax.device_put(w2_all),
        jax.device_put(b2_mean),
    )


# ---------------------------------------------------------------------------
# Per-call forward: single pallas_call, no grid, no per-call weight plumbing.
# ---------------------------------------------------------------------------
def ensemble_forward(x, w1_all, b1_all, w2_all, b2_mean):
    batch, d_in = x.shape
    nh = w1_all.shape[1]
    d_out = w2_all.shape[1]

    itemsize = jnp.dtype(jnp.float32).itemsize
    flops = 2 * batch * d_in * nh + 2 * batch * nh * d_out
    bytes_accessed = itemsize * (
        batch * d_in + d_in * nh + nh + nh * d_out + d_out + batch * d_out
    )
    cost = pl.CostEstimate(
        flops=flops, transcendentals=0, bytes_accessed=bytes_accessed
    )

    return pl.pallas_call(
        ensemble_fused_kernel,
        out_shape=jax.ShapeDtypeStruct((batch, d_out), x.dtype),
        # Single invocation, everything resident in VMEM (~42 KB f32 here).
        in_specs=[pl.BlockSpec(memory_space=pltpu.MemorySpace.VMEM) for _ in range(5)],
        out_specs=pl.BlockSpec(memory_space=pltpu.MemorySpace.VMEM),
        cost_estimate=cost,
    )(x, w1_all, b1_all, w2_all, b2_mean)


ensemble_forward_jit = jax.jit(ensemble_forward)


# ---------------------------------------------------------------------------
# Pure-JAX reference: mean over stacked per-model outputs
# (== torch.mean(torch.stack([m(x) for m in models]), dim=0)).
# ---------------------------------------------------------------------------
def ensemble_reference(x, w1, b1, w2, b2):
    def one(wa, ba, wb, bb):
        h = jnp.maximum(x @ wa + ba, 0.0)
        return h @ wb + bb

    outs = jax.vmap(one)(w1, b1, w2, b2)  # [N, B, D_out]
    return jnp.mean(outs, axis=0)


if __name__ == "__main__":
    key = jax.random.PRNGKey(0)
    n_models, batch, d_in, hidden, d_out = 4, 8, 32, 64, 32

    k_x, k_w1, k_b1, k_w2, k_b2 = jax.random.split(key, 5)
    x = jax.random.normal(k_x, (batch, d_in), dtype=jnp.float32)
    w1 = jax.random.normal(k_w1, (n_models, d_in, hidden), dtype=jnp.float32) * 0.1
    b1 = jax.random.normal(k_b1, (n_models, 1, hidden), dtype=jnp.float32) * 0.1
    w2 = jax.random.normal(k_w2, (n_models, hidden, d_out), dtype=jnp.float32) * 0.1
    b2 = jax.random.normal(k_b2, (n_models, 1, d_out), dtype=jnp.float32) * 0.1

    # One-time prep (module construction time), not part of the forward path.
    w1_all, b1_all, w2_all, b2_mean = build_ensemble_params(w1, b1, w2, b2)

    out = ensemble_forward_jit(x, w1_all, b1_all, w2_all, b2_mean)
    out = jax.block_until_ready(out)

    ref = jax.block_until_ready(ensemble_reference(x, w1, b1, w2, b2))
    assert out.shape == (batch, d_out)
    assert jnp.allclose(out, ref, atol=1e-5, rtol=1e-5), "mismatch vs reference"

    print("KERNEL_OK")
</pallas_src>

<mosaic_0001>
module attributes {stable_mosaic.version = 11 : i64} {
  func.func @ensemble_fused_kernel(%arg0: memref<8x32xf32, #tpu.memory_space<vmem>>, %arg1: memref<32x256xf32, #tpu.memory_space<vmem>>, %arg2: memref<1x256xf32, #tpu.memory_space<vmem>>, %arg3: memref<256x32xf32, #tpu.memory_space<vmem>>, %arg4: memref<1x32xf32, #tpu.memory_space<vmem>>, %arg5: memref<8x32xf32, #tpu.memory_space<vmem>>) attributes {dimension_semantics = [], scalar_prefetch = 0 : i64, scratch_operands = 0 : i64, tpu.core_type = #tpu.core_type<tc>} {
    %c0 = arith.constant 0 : index
    %c0_0 = arith.constant 0 : index
    %0 = vector.load %arg0[%c0, %c0_0] : memref<8x32xf32, #tpu.memory_space<vmem>>, vector<8x32xf32>
    %c0_1 = arith.constant 0 : index
    %c0_2 = arith.constant 0 : index
    %1 = vector.load %arg1[%c0_1, %c0_2] : memref<32x256xf32, #tpu.memory_space<vmem>>, vector<32x256xf32>
    %cst = arith.constant dense<0.000000e+00> : vector<8x256xf32>
    %2 = tpu.matmul %0, %1, %cst {dimension_numbers = #tpu.dot_dimension_numbers<[1], [0], [0], [1], [0, 0, 1, 1], [], []>} : vector<8x32xf32>, vector<32x256xf32>, vector<8x256xf32> -> vector<8x256xf32>
    %c0_3 = arith.constant 0 : index
    %c0_4 = arith.constant 0 : index
    %3 = vector.load %arg2[%c0_3, %c0_4] : memref<1x256xf32, #tpu.memory_space<vmem>>, vector<1x256xf32>
    %4 = vector.broadcast %3 : vector<1x256xf32> to vector<8x256xf32>
    %5 = arith.addf %2, %4 : vector<8x256xf32>
    %cst_5 = arith.constant 0.000000e+00 : f32
    %6 = vector.broadcast %cst_5 : f32 to vector<8x256xf32>
    %7 = arith.maximumf %5, %6 : vector<8x256xf32>
    %c0_6 = arith.constant 0 : index
    %c0_7 = arith.constant 0 : index
    %8 = vector.load %arg3[%c0_6, %c0_7] : memref<256x32xf32, #tpu.memory_space<vmem>>, vector<256x32xf32>
    %cst_8 = arith.constant dense<0.000000e+00> : vector<8x32xf32>
    %9 = tpu.matmul %7, %8, %cst_8 {dimension_numbers = #tpu.dot_dimension_numbers<[1], [0], [0], [1], [0, 0, 1, 1], [], []>} : vector<8x256xf32>, vector<256x32xf32>, vector<8x32xf32> -> vector<8x32xf32>
    %c0_9 = arith.constant 0 : index
    %c0_10 = arith.constant 0 : index
    %10 = vector.load %arg4[%c0_9, %c0_10] : memref<1x32xf32, #tpu.memory_space<vmem>>, vector<1x32xf32>
    %11 = vector.broadcast %10 : vector<1x32xf32> to vector<8x32xf32>
    %12 = arith.addf %9, %11 : vector<8x32xf32>
    %c0_11 = arith.constant 0 : index
    %c0_12 = arith.constant 0 : index
    %13 = vector.load %arg5[%c0_11, %c0_12] : memref<8x32xf32, #tpu.memory_space<vmem>>, vector<8x32xf32>
    tpu.vector_store %arg5[%c0_11, %c0_12], %12 {strides = array<i32>} : memref<8x32xf32, #tpu.memory_space<vmem>>, vector<8x32xf32>,
    return
  }
}

</mosaic_0001>

<llo_original>
// kernel: ensemble_forward.1
$region0: #{ensemble_forward.1}
  #allocation0 [shape = 'u32[]', space=smem, size = 0x4, offset = 0x4, fixed_abs, tag = 'smem constant byte address 0x4 - core index']
  #allocation1 [shape = 'u32[72,128]{1,0:T(1,128)}', space=vmem, size = 0x9000, scoped, tag = 'internal scratch']
  %s0 = inlined_call_operand.vmem [shape: f32[8,32], index: 0, kind: input, shape index: {}]
  %s1 = inlined_call_operand.vmem [shape: f32[32,256], index: 1, kind: input, shape index: {}]
  %s2 = inlined_call_operand.vmem [shape: f32[1,256], index: 2, kind: input, shape index: {}]
  %s3 = inlined_call_operand.vmem [shape: f32[256,32], index: 3, kind: input, shape index: {}]
  %s4 = inlined_call_operand.vmem [shape: f32[1,32], index: 4, kind: input, shape index: {}]
  %s5 = inlined_call_operand.hbm [shape: f32[8,32], index: 5, kind: output, shape index: {}]
  %s6 = sld [smem:[#allocation0]]
  $region30: #{ensemble_forward.1} parent=0
    _
  %s8 = ssub.s32 1, %s6
  %s9 = scalar_select 0, %s8, %s6
  $region1: #{ensemble_forward.1} parent=0
    #allocation2 [shape = 'u8[4096]{0}', space=vmem, size = 0x1000, scoped, tag = 'output window, operand 0, single buffered']
    #allocation3 [shape = 's32[1]{0}', space=sflag, size = 0x4, scoped, tag = 'scoped memory for ensemble_forward.1']
    %10 = vsyncpa [#allocation3], 0
    // Predicated region
    $region2: #{ensemble_forward.1} parent=1 // pred_check
      _
    $region3: #{ensemble_forward.1} parent=1 // pred_check_branch
      %12 = sbr.rel (0) target = $region5
    $region4: #{ensemble_forward.1} parent=1 // pred_region
      _
    $region5: #{ensemble_forward.1} parent=1 // pred_fallthru
      _
    // Predicated region
    $region6: #{ensemble_forward.1} parent=1 // pred_check
      _
    $region7: #{ensemble_forward.1} parent=1 // pred_check_branch
      %14 = sbr.rel (0) target = $region9
    $region8: #{ensemble_forward.1} parent=1 // pred_region
      _
    $region9: #{ensemble_forward.1} parent=1 // pred_fallthru
      _
    // Predicated region
    $region10: #{ensemble_forward.1} parent=1 // pred_check
      _
    $region11: #{ensemble_forward.1} parent=1 // pred_check_branch
      %16 = sbr.rel (0) target = $region13
    $region12: #{ensemble_forward.1} parent=1 // pred_region
      _
    $region13: #{ensemble_forward.1} parent=1 // pred_fallthru
      _
    // Predicated region
    $region14: #{ensemble_forward.1} parent=1 // pred_check
      _
    $region15: #{ensemble_forward.1} parent=1 // pred_check_branch
      %18 = sbr.rel (0) target = $region17
    $region16: #{ensemble_forward.1} parent=1 // pred_region
      _
    $region17: #{ensemble_forward.1} parent=1 // pred_fallthru
      _
    // Predicated region
    $region18: #{ensemble_forward.1} parent=1 // pred_check
      _
    $region19: #{ensemble_forward.1} parent=1 // pred_check_branch
      %20 = sbr.rel (0) target = $region21
    $region20: #{ensemble_forward.1} parent=1 // pred_region
      _
    $region21: #{ensemble_forward.1} parent=1 // pred_fallthru
      _
    %v21 = vld [vmem:[%s0] sm:$0xff]
    %v22 = vld [vmem:[%s1] sm:$0xff]
    %v23 = vld [vmem:[%s1 + $0x8] sm:$0xff]
    %v24 = vld [vmem:[%s1 + $0x10] sm:$0xff]
    %v25 = vld [vmem:[%s1 + $0x18] sm:$0xff]
    %v26 = vld [vmem:[%s1 + $0x20] sm:$0xff]
    %v27 = vld [vmem:[%s1 + $0x28] sm:$0xff]
    %v28 = vld [vmem:[%s1 + $0x30] sm:$0xff]
    %v29 = vld [vmem:[%s1 + $0x38] sm:$0xff]
    %v30 = vld [vmem:[%s2] sm:$0x3]
    %v32 = vperm.slane %v30, 0
    %v33 = vperm.slane %v30, 1
    %vm36 = vcmask 261120
    %v38 = vsel %vm36, %v21, 0
    %40 = vmatpush.msra.mxu0 0.0
    %41 = vmatpush.msra.mxu0 0.0
    %42 = vmatpush.msra.mxu0 0.0
    %43 = vmatpush.msra.mxu0 0.0
    %44 = vmatpush.msra.mxu0 0.0
    %45 = vmatpush.msra.mxu0 0.0
    %46 = vmatpush.msra.mxu0 0.0
    %47 = vmatpush.msra.mxu0 0.0
    %48 = vmatpush.msra.mxu0 0.0
    %49 = vmatpush.msra.mxu0 0.0
    %50 = vmatpush.msra.mxu0 0.0
    %51 = vmatpush.msra.mxu0 0.0
    %52 = vmatpush.msra.mxu0 %v28
    %53 = vmatpush.msra.mxu0 %v26
    %54 = vmatpush.msra.mxu0 %v24
    %55 = vmatpush.msra.mxu0 %v22
    %56 = vmatmul.f32.gmra.mxu0 %v38
    %v57 = vpop.f32.mrf.mxu0
    %v58 = vadd.f32 %v32, %v57
    %59 = vdwg.mxu0
    %60 = vmatpush.msra.mxu0 0.0
    %61 = vmatpush.msra.mxu0 0.0
    %62 = vmatpush.msra.mxu0 0.0
    %63 = vmatpush.msra.mxu0 0.0
    %64 = vmatpush.msra.mxu0 0.0
    %65 = vmatpush.msra.mxu0 0.0
    %66 = vmatpush.msra.mxu0 0.0
    %67 = vmatpush.msra.mxu0 0.0
    %68 = vmatpush.msra.mxu0 0.0
    %69 = vmatpush.msra.mxu0 0.0
    %70 = vmatpush.msra.mxu0 0.0
    %71 = vmatpush.msra.mxu0 0.0
    %72 = vmatpush.msra.mxu0 %v29
    %73 = vmatpush.msra.mxu0 %v27
    %74 = vmatpush.msra.mxu0 %v25
    %75 = vmatpush.msra.mxu0 %v23
    %76 = vmatmul.f32.gmra.mxu0 %v38
    %v77 = vpop.f32.mrf.mxu0
    %v78 = vadd.f32 %v33, %v77
    %79 = vdwg.mxu0
    %v80 = vmax.f32 %v58, 0.0
    %v81 = vmax.f32 %v78, 0.0
    %v82 = vld [vmem:[%s3] sm:$0xff]
    %v83 = vld [vmem:[%s3 + $0x8] sm:$0xff]
    %v84 = vld [vmem:[%s3 + $0x10] sm:$0xff]
    %v85 = vld [vmem:[%s3 + $0x18] sm:$0xff]
    %v86 = vld [vmem:[%s3 + $0x20] sm:$0xff]
    %v87 = vld [vmem:[%s3 + $0x28] sm:$0xff]
    %v88 = vld [vmem:[%s3 + $0x30] sm:$0xff]
    %v89 = vld [vmem:[%s3 + $0x38] sm:$0xff]
    %v90 = vld [vmem:[%s3 + $0x40] sm:$0xff]
    %v91 = vld [vmem:[%s3 + $0x48] sm:$0xff]
    %v92 = vld [vmem:[%s3 + $0x50] sm:$0xff]
    %v93 = vld [vmem:[%s3 + $0x58] sm:$0xff]
    %v94 = vld [vmem:[%s3 + $0x60] sm:$0xff]
    %v95 = vld [vmem:[%s3 + $0x68] sm:$0xff]
    %v96 = vld [vmem:[%s3 + $0x70] sm:$0xff]
    %v97 = vld [vmem:[%s3 + $0x78] sm:$0xff]
    %v98 = vld [vmem:[%s3 + $0x80] sm:$0xff]
    %v99 = vld [vmem:[%s3 + $0x88] sm:$0xff]
    %v100 = vld [vmem:[%s3 + $0x90] sm:$0xff]
    %v101 = vld [vmem:[%s3 + $0x98] sm:$0xff]
    %v102 = vld [vmem:[%s3 + $0xa0] sm:$0xff]
    %v103 = vld [vmem:[%s3 + $0xa8] sm:$0xff]
    %v104 = vld [vmem:[%s3 + $0xb0] sm:$0xff]
    %v105 = vld [vmem:[%s3 + $0xb8] sm:$0xff]
    %v106 = vld [vmem:[%s3 + $0xc0] sm:$0xff]
    %v107 = vld [vmem:[%s3 + $0xc8] sm:$0xff]
    %v108 = vld [vmem:[%s3 + $0xd0] sm:$0xff]
    %v109 = vld [vmem:[%s3 + $0xd8] sm:$0xff]
    %v110 = vld [vmem:[%s3 + $0xe0] sm:$0xff]
    %v111 = vld [vmem:[%s3 + $0xe8] sm:$0xff]
    %v112 = vld [vmem:[%s3 + $0xf0] sm:$0xff]
    %v113 = vld [vmem:[%s3 + $0xf8] sm:$0xff]
    %v114 = vld [vmem:[%s4] sm:$0x1]
    %v116 = vperm.slane %v114, 0
    %118 = vmatpush.msra.mxu0 %v97
    %119 = vmatpush.msra.mxu0 %v96
    %120 = vmatpush.msra.mxu0 %v95
    %121 = vmatpush.msra.mxu0 %v94
    %122 = vmatpush.msra.mxu0 %v93
    %123 = vmatpush.msra.mxu0 %v92
    %124 = vmatpush.msra.mxu0 %v91
    %125 = vmatpush.msra.mxu0 %v90
    %126 = vmatpush.msra.mxu0 %v89
    %127 = vmatpush.msra.mxu0 %v88
    %128 = vmatpush.msra.mxu0 %v87
    %129 = vmatpush.msra.mxu0 %v86
    %130 = vmatpush.msra.mxu0 %v85
    %131 = vmatpush.msra.mxu0 %v84
    %132 = vmatpush.msra.mxu0 %v83
    %133 = vmatpush.msra.mxu0 %v82
    %134 = vmatmul.f32.gmra.mxu0 %v80
    %v135 = vpop.f32.mrf.mxu0
    %v136 = vadd.f32 %v116, %v135
    %137 = vdwg.mxu0
    %138 = vmatpush.msra.mxu0 %v113
    %139 = vmatpush.msra.mxu0 %v112
    %140 = vmatpush.msra.mxu0 %v111
    %141 = vmatpush.msra.mxu0 %v110
    %142 = vmatpush.msra.mxu0 %v109
    %143 = vmatpush.msra.mxu0 %v108
    %144 = vmatpush.msra.mxu0 %v107
    %145 = vmatpush.msra.mxu0 %v106
    %146 = vmatpush.msra.mxu0 %v105
    %147 = vmatpush.msra.mxu0 %v104
    %148 = vmatpush.msra.mxu0 %v103
    %149 = vmatpush.msra.mxu0 %v102
    %150 = vmatpush.msra.mxu0 %v101
    %151 = vmatpush.msra.mxu0 %v100
    %152 = vmatpush.msra.mxu0 %v99
    %153 = vmatpush.msra.mxu0 %v98
    %154 = vmatmul.f32.gmra.mxu0 %v81
    %v155 = vpop.f32.mrf.mxu0
    %v156 = vadd.f32 %v136, %v155
    %157 = vdwg.mxu0
    %158 = vst.msk [vmem:[#allocation2] sm:$0xff] %vm36, %v156
    // Predicated region
    $region22: #{ensemble_forward.1} parent=1 // pred_check
      _
    $region23: #{ensemble_forward.1} parent=1 // pred_check_branch
      %160 = sbr.rel (0) target = $region25
    $region24: #{ensemble_forward.1} parent=1 // pred_region
      %162 = vsyncadd [#allocation3], 0
      %s164 = sshll.u32 [#allocation2], 4
      %s165 = int_to_ptr.vmem [resolvable:$true] %s164
      %s166 = sshll.u32 %s5, 4
      %s167 = int_to_ptr.hbm [resolvable:$true] %s166
      %169 = dma.vmem_to_hbm [thread:$0]  %s165, 128, %s167, [#allocation3]
    $region25: #{ensemble_forward.1} parent=1 // pred_fallthru
      _
    // Predicated region
    $region26: #{ensemble_forward.1} parent=1 // pred_check
      _
    $region27: #{ensemble_forward.1} parent=1 // pred_check_branch
      %171 = sbr.rel (0) target = $region29
    $region28: #{ensemble_forward.1} parent=1 // pred_region
      %173 = dma.done [#allocation3], 128
    $region29: #{ensemble_forward.1} parent=1 // pred_fallthru
      _
    %174 = vsyncpa [#allocation3], 1

</llo_original>
